<compile_context>
chip_gen: v7x
topology: tpu7x:2x2x1
jax: 0.10.0
libtpu: 0.0.40
codegen_flags: <defaults>
</compile_context>

<pallas_src>
import jax
import jax.numpy as jnp
from jax.experimental import pallas as pl
from jax.experimental.pallas import tpu as pltpu

LANES = 128
SUBLANES = 8
CHUNK_ROWS = 512          # in-kernel chunk: bounds live f32 temporaries (~256 KiB each)
MAX_BLOCK_ROWS = 8192     # (8192, 128) f32 = 4 MiB per input per pipeline buffer


def _round_up(x, m):
    return ((x + m - 1) // m) * m


def _select_tiling():
    """Per-generation block-size / scoped-VMEM budget."""
    try:
        vmem_cap = int(pltpu.get_tpu_info().vmem_capacity_bytes)
    except Exception:
        vmem_cap = 64 << 20   # conservative fallback: v7x per-TensorCore physical VMEM
    # Raise above v5e's 16 MiB scoped default, stay well under v7x's 64 MiB
    # physical budget (headroom for temporaries + compiler scratch).
    vmem_limit = int(min(40 << 20, max(16 << 20, (vmem_cap * 3) // 5)))
    # Double-buffered f32 input blocks: 2 inputs x 2 buffers x 512 B per row;
    # keep them within roughly half of the scoped budget.
    max_rows = (vmem_limit // 2) // (2 * 2 * LANES * 4)
    if max_rows >= CHUNK_ROWS:
        max_rows = min(MAX_BLOCK_ROWS, (max_rows // CHUNK_ROWS) * CHUNK_ROWS)
    else:
        max_rows = max(SUBLANES, (max_rows // SUBLANES) * SUBLANES)
    return max_rows, vmem_limit


def _make_bce_kernel(block_rows, chunk_rows, valid_rows, needs_mask, binary_targets):
    """Per-block partial BCE sum, accumulated into an (8, 128) tile."""
    num_chunks = block_rows // chunk_rows
    groups = chunk_rows // SUBLANES

    def kernel(y_ref, p_ref, out_ref):
        block_row0 = pl.program_id(0) * block_rows

        def chunk_sum(c, acc):
            start = c * chunk_rows
            if not isinstance(start, int):
                start = pl.multiple_of(start, chunk_rows)
            y = y_ref[pl.ds(start, chunk_rows), :].astype(jnp.float32)
            p = p_ref[pl.ds(start, chunk_rows), :].astype(jnp.float32)

            if needs_mask:
                # Zero the ragged tail (rows >= valid_rows). Zeroed y/p give a
                # clamped loss of exactly 0 below, and the select also discards
                # any garbage (even NaN) read from the out-of-bounds block tail.
                rid = (block_row0 + start +
                       jax.lax.broadcasted_iota(jnp.int32, (chunk_rows, LANES), 0))
                valid = rid < valid_rows
                y = jnp.where(valid, y, 0.0)
                p = jnp.where(valid, p, 0.0)

            # PyTorch BCELoss requires p in [0,1]; clamp defensively so stray
            # out-of-range values don't turn into NaNs (no-op for valid input).
            p = jnp.clip(p, 0.0, 1.0)

            if binary_targets:
                # Single transcendental per element (valid only for y in {0,1}).
                q = jnp.where(y >= 0.5, p, 1.0 - p)
                loss = -jnp.maximum(jnp.log(q), -100.0)
            else:
                # Exact BCE with PyTorch's -100 log clamp (soft labels OK).
                log_p = jnp.maximum(jnp.log(p), -100.0)
                log_1mp = jnp.maximum(jnp.log1p(-p), -100.0)
                loss = -(y * log_p + (1.0 - y) * log_1mp)

            # Reduce only along the sublane-group axis: pure VPU adds.
            return acc + loss.reshape(groups, SUBLANES, LANES).sum(axis=0)

        acc0 = jnp.zeros((SUBLANES, LANES), jnp.float32)
        if num_chunks == 1:
            out_ref[...] = chunk_sum(0, acc0)
        else:
            # Rolled loop bounds the live range of the per-chunk temporaries.
            out_ref[...] = jax.lax.fori_loop(0, num_chunks, chunk_sum, acc0)

    return kernel


def path_est_dnn_loss(right_y, est_y, binary_targets=False):
    """BCE(est_y, right_y), mean reduction over all elements."""
    assert right_y.shape == est_y.shape
    total_n = right_y.size

    y_flat = right_y.reshape(-1)
    p_flat = est_y.reshape(-1)

    # Only copy (pad) when the lane-dense (rows, 128) reshape is impossible or
    # the input is tiny; large lane-aligned inputs reach the kernel untouched
    # and the ragged tail is masked in-kernel instead of padded in HBM.
    if total_n % LANES != 0 or total_n < SUBLANES * LANES:
        padded_len = _round_up(max(total_n, 1), SUBLANES * LANES)
        pad = padded_len - total_n
        # y=0, p=0 pads contribute exactly 0 to the sum (clamped logs * 0).
        y_flat = jnp.pad(y_flat, (0, pad))
        p_flat = jnp.pad(p_flat, (0, pad))
    else:
        padded_len = total_n
    rows = padded_len // LANES            # >= SUBLANES

    y2 = y_flat.reshape(rows, LANES)
    p2 = p_flat.reshape(rows, LANES)

    max_block_rows, vmem_limit = _select_tiling()

    # Aim for >= 2 grid steps so v7x's two TensorCores both get work.
    block_rows = min(max_block_rows, _round_up(-(-rows // 2), SUBLANES))
    if block_rows > CHUNK_ROWS:
        block_rows -= block_rows % CHUNK_ROWS     # multiple of the chunk size
        chunk_rows = CHUNK_ROWS
    else:
        chunk_rows = block_rows
    num_blocks = -(-rows // block_rows)
    needs_mask = (rows % block_rows) != 0

    kernel = _make_bce_kernel(block_rows, chunk_rows, rows, needs_mask,
                              binary_targets)

    n_proc = num_blocks * block_rows * LANES
    cost = pl.CostEstimate(
        flops=6 * n_proc,
        transcendentals=(1 if binary_targets else 2) * n_proc,
        bytes_accessed=(y2.size * y2.dtype.itemsize
                        + p2.size * p2.dtype.itemsize
                        + num_blocks * SUBLANES * LANES * 4),
    )

    partials = pl.pallas_call(
        kernel,
        out_shape=jax.ShapeDtypeStruct((num_blocks, SUBLANES, LANES),
                                       jnp.float32),
        grid_spec=pltpu.PrefetchScalarGridSpec(
            num_scalar_prefetch=0,
            grid=(num_blocks,),
            in_specs=[
                pl.BlockSpec((block_rows, LANES), lambda i: (i, 0)),
                pl.BlockSpec((block_rows, LANES), lambda i: (i, 0)),
            ],
            out_specs=pl.BlockSpec((None, SUBLANES, LANES),
                                   lambda i: (i, 0, 0)),
        ),
        compiler_params=pltpu.CompilerParams(
            dimension_semantics=("parallel",),
            vmem_limit_bytes=vmem_limit),
        cost_estimate=cost,
    )(y2, p2)

    # Tiny epilogue in plain JAX: cross-lane sum + trace-time-precomputed 1/N
    # (divisor is the UNPADDED element count).
    return jnp.sum(partials) * jnp.float32(1.0 / total_n)


def _reference_bce(right_y, est_y):
    p = est_y.astype(jnp.float32)
    y = right_y.astype(jnp.float32)
    log_p = jnp.maximum(jnp.log(p), -100.0)
    log_1mp = jnp.maximum(jnp.log1p(-p), -100.0)
    return jnp.mean(-(y * log_p + (1.0 - y) * log_1mp))


if __name__ == "__main__":
    key = jax.random.PRNGKey(0)

    # Shapes chosen to exercise: lane-aligned no-pad path, the lane-pad
    # fallback (210 elems), the in-kernel ragged-tail mask (1152 elems -> 9
    # rows, not a block multiple), and the multi-chunk fori_loop path.
    for shape in [(2, 4, 16, 16), (2, 3, 7, 5), (3, 3, 128), (2, 8, 128, 128)]:
        k1, k2, key = jax.random.split(key, 3)
        # est_y: predictions in (0, 1) (e.g. output of a sigmoid head).
        est_y = jax.nn.sigmoid(jax.random.normal(k1, shape, dtype=jnp.float32))
        # right_y: binary targets in {0, 1}.
        right_y = jax.random.bernoulli(k2, p=0.5, shape=shape).astype(
            jnp.float32)

        loss = path_est_dnn_loss(right_y, est_y)
        jax.block_until_ready(loss)

        ref = _reference_bce(right_y, est_y)
        assert jnp.allclose(loss, ref, rtol=1e-4, atol=1e-6), (shape, loss, ref)

    print("KERNEL_OK")
</pallas_src>

<mosaic_0001>
module attributes {stable_mosaic.version = 11 : i64} {
  func.func @kernel(%arg0: i32, %arg1: memref<8x128xf32, #tpu.memory_space<vmem>>, %arg2: memref<8x128xf32, #tpu.memory_space<vmem>>, %arg3: memref<1x8x128xf32, #tpu.memory_space<vmem>>) attributes {dimension_semantics = [#tpu.dimension_semantics<parallel>], iteration_bounds = array<i64: 2>, scalar_prefetch = 0 : i64, scratch_operands = 0 : i64, tpu.core_type = #tpu.core_type<tc>, window_params = [{transform_indices = @transform_0, window_bounds = array<i64: 8, 128>}, {transform_indices = @transform_1, window_bounds = array<i64: 8, 128>}, {transform_indices = @transform_2, window_bounds = array<i64: 1, 8, 128>}]} {
    %cst = arith.constant 0.000000e+00 : f32
    %0 = vector.broadcast %cst : f32 to vector<8x128xf32>
    %c0 = arith.constant 0 : index
    %c0_0 = arith.constant 0 : index
    %1 = vector.load %arg1[%c0, %c0_0] : memref<8x128xf32, #tpu.memory_space<vmem>>, vector<8x128xf32>
    %c0_1 = arith.constant 0 : index
    %c0_2 = arith.constant 0 : index
    %2 = vector.load %arg2[%c0_1, %c0_2] : memref<8x128xf32, #tpu.memory_space<vmem>>, vector<8x128xf32>
    %cst_3 = arith.constant 0.000000e+00 : f32
    %cst_4 = arith.constant 1.000000e+00 : f32
    %3 = vector.broadcast %cst_3 : f32 to vector<8x128xf32>
    %4 = arith.maximumf %3, %2 : vector<8x128xf32>
    %5 = vector.broadcast %cst_4 : f32 to vector<8x128xf32>
    %6 = arith.minimumf %5, %4 : vector<8x128xf32>
    %7 = math.log %6 : vector<8x128xf32>
    %cst_5 = arith.constant -1.000000e+02 : f32
    %8 = vector.broadcast %cst_5 : f32 to vector<8x128xf32>
    %9 = arith.maximumf %7, %8 : vector<8x128xf32>
    %cst_6 = arith.constant 0.000000e+00 : f32
    %10 = vector.broadcast %cst_6 : f32 to vector<8x128xf32>
    %11 = arith.subf %10, %6 : vector<8x128xf32>
    %12 = math.log1p %11 : vector<8x128xf32>
    %cst_7 = arith.constant -1.000000e+02 : f32
    %13 = vector.broadcast %cst_7 : f32 to vector<8x128xf32>
    %14 = arith.maximumf %12, %13 : vector<8x128xf32>
    %15 = arith.mulf %1, %9 : vector<8x128xf32>
    %cst_8 = arith.constant 1.000000e+00 : f32
    %16 = vector.broadcast %cst_8 : f32 to vector<8x128xf32>
    %17 = arith.subf %16, %1 : vector<8x128xf32>
    %18 = arith.mulf %17, %14 : vector<8x128xf32>
    %19 = arith.addf %15, %18 : vector<8x128xf32>
    %cst_9 = arith.constant 0.000000e+00 : f32
    %20 = vector.broadcast %cst_9 : f32 to vector<8x128xf32>
    %21 = arith.subf %20, %19 : vector<8x128xf32>
    %22 = vector.shape_cast %21 : vector<8x128xf32> to vector<1x8x128xf32>
    %cst_10 = arith.constant dense<0.000000e+00> : vector<8x128xf32>
    %23 = vector.multi_reduction <add>, %22, %cst_10 [0] : vector<1x8x128xf32> to vector<8x128xf32>
    %24 = arith.addf %0, %23 : vector<8x128xf32>
    %c0_11 = arith.constant 0 : index
    %c0_12 = arith.constant 0 : index
    %c0_13 = arith.constant 0 : index
    %25 = vector.load %arg3[%c0_11, %c0_12, %c0_13] : memref<1x8x128xf32, #tpu.memory_space<vmem>>, vector<1x8x128xf32>
    %26 = vector.shape_cast %25 : vector<1x8x128xf32> to vector<8x128xf32>
    %27 = vector.shape_cast %24 : vector<8x128xf32> to vector<1x8x128xf32>
    tpu.vector_store %arg3[%c0_11, %c0_12, %c0_13], %27 {strides = array<i32>} : memref<1x8x128xf32, #tpu.memory_space<vmem>>, vector<1x8x128xf32>,
    return
  }
  func.func @transform_0(%arg0: i32) -> (i32, i32) {
    %c0_i32 = arith.constant 0 : i32
    %c0_i32_0 = arith.constant 0 : i32
    return %arg0, %c0_i32 : i32, i32
  }
  func.func @transform_1(%arg0: i32) -> (i32, i32) {
    %c0_i32 = arith.constant 0 : i32
    %c0_i32_0 = arith.constant 0 : i32
    return %arg0, %c0_i32 : i32, i32
  }
  func.func @transform_2(%arg0: i32) -> (i32, i32, i32) {
    %c0_i32 = arith.constant 0 : i32
    %c0_i32_0 = arith.constant 0 : i32
    %c0_i32_1 = arith.constant 0 : i32
    return %arg0, %c0_i32, %c0_i32_0 : i32, i32, i32
  }
}

</mosaic_0001>

<llo_original>
// kernel: tpu_custom_call.1
$region0: #{tpu_custom_call.1}
  #allocation0 [shape = 'u32[]', space=smem, size = 0x4, offset = 0x4, fixed_abs, tag = 'smem constant byte address 0x4 - core index']
  #allocation1 [shape = 'u32[144,128]{1,0:T(1,128)}', space=vmem, size = 0x12000, scoped, tag = 'internal scratch']
  %s0 = inlined_call_operand.hbm [shape: f32[16,128], index: 0, kind: input, shape index: {}]
  %s1 = inlined_call_operand.hbm [shape: f32[16,128], index: 1, kind: input, shape index: {}]
  %s2 = inlined_call_operand.hbm [shape: f32[2,8,128], index: 2, kind: output, shape index: {}]
  %s3 = sld [smem:[#allocation0]]
  $region49: #{tpu_custom_call.1} parent=0
    _
  %s5 = ssub.s32 1, %s3
  %s6 = scalar_select 0, %s5, %s3
  $region1: #{tpu_custom_call.1} parent=0
    #allocation2 [shape = 'u8[8192]{0}', space=vmem, size = 0x2000, scoped, tag = 'input window, operand 0']
    #allocation3 [shape = 's32[2]{0}', space=sflag, size = 0x8, scoped, tag = 'scoped memory for tpu_custom_call.1']
    #allocation4 [shape = 's32[2]{0}', space=sflag, size = 0x8, scoped, tag = 'scoped memory for tpu_custom_call.1']
    #allocation5 [shape = 'u8[8192]{0}', space=vmem, size = 0x2000, scoped, tag = 'input window, operand 1']
    #allocation6 [shape = 's32[2]{0}', space=sflag, size = 0x8, scoped, tag = 'scoped memory for tpu_custom_call.1']
    #allocation7 [shape = 'u8[8192]{0}', space=vmem, size = 0x2000, scoped, tag = 'output window, operand 0']
    %7 = vsyncpa [#allocation3], 0
    %s8 = scalar_lea.sflag [#allocation3], 1
    %9 = vsyncpa %s8, 0
    %10 = vsyncpa [#allocation6], 0
    %s11 = scalar_lea.sflag [#allocation6], 1
    %12 = vsyncpa %s11, 0
    %13 = vsyncpa [#allocation4], 0
    %s14 = scalar_lea.sflag [#allocation4], 1
    %15 = vsyncpa %s14, 0
    loop: start=0, step=1, limit=4
    $region2: #{tpu_custom_call.1} parent=1 // loop_pre_header
      _
    $region3: #{tpu_custom_call.1} parent=1 // loop_header
      %s17 = sphi 0, %s21
      %p18 = scmp.ge.s32.totalorder %s17, 4
      %s27 = sphi 0, %s29
      %s30 = sphi 0, %s27
      %s31 = sphi 0, %s30
      %s47 = sphi 0, %s31
      %s53 = sphi 0, %s55
      %s56 = sphi 0, %s53
      %s57 = sphi 0, %s56
      %s73 = sphi 0, %s57
      %s79 = sphi 0, %s81
      %s82 = sphi 0, %s79
      %s83 = sphi 0, %s82
      %s99 = sphi 0, %s83
    $region4: #{tpu_custom_call.1} parent=1 // loop_header_branch
      %20 = sbr.rel (%p18) target = $region8
    $region5: #{tpu_custom_call.1} parent=1 // loop_body
      %s22 = ssub.s32 %s17, 1
      %s23 = ssub.s32 %s17, 2
      %s24 = sadd.s32 %s17, 1
      %s25 = ssub.s32 %s17, %s24
      %p26 = scmp.eq.s32.totalorder %s25, 0
      %s28 = sadd.s32 %s27, 1
      %s29 = scalar_select %p26, %s27, %s28
      %p32 = pneg %p26
      %p33 = scmp.eq.s32.totalorder %s17, 1
      %p34 = por %p32, %p33
      %p35 = scmp.ne.s32.totalorder %s27, %s30
      %p36 = scmp.eq.s32.totalorder %s17, 0
      %p37 = por %p35, %p36
      %p38 = scmp.ne.s32.totalorder %s27, %s30
      %p39 = scmp.eq.s32.totalorder %s22, 1
      %p40 = por %p38, %p39
      %p41 = scmp.ne.s32.totalorder %s30, %s31
      %p42 = scmp.eq.s32.totalorder %s22, 0
      %p43 = por %p41, %p42
      %p44 = scmp.ne.s32.totalorder %s30, %s31
      %p45 = scmp.eq.s32.totalorder %s23, 1
      %p46 = por %p44, %p45
      %p48 = scmp.ne.s32.totalorder %s31, %s47
      %p49 = scmp.eq.s32.totalorder %s23, 0
      %p50 = por %p48, %p49
      %s51 = ssub.s32 %s17, %s24
      %p52 = scmp.eq.s32.totalorder %s51, 0
      %s54 = sadd.s32 %s53, 1
      %s55 = scalar_select %p52, %s53, %s54
      %p58 = pneg %p52
      %p59 = scmp.eq.s32.totalorder %s17, 1
      %p60 = por %p58, %p59
      %p61 = scmp.ne.s32.totalorder %s53, %s56
      %p62 = scmp.eq.s32.totalorder %s17, 0
      %p63 = por %p61, %p62
      %p64 = scmp.ne.s32.totalorder %s53, %s56
      %p65 = scmp.eq.s32.totalorder %s22, 1
      %p66 = por %p64, %p65
      %p67 = scmp.ne.s32.totalorder %s56, %s57
      %p68 = scmp.eq.s32.totalorder %s22, 0
      %p69 = por %p67, %p68
      %p70 = scmp.ne.s32.totalorder %s56, %s57
      %p71 = scmp.eq.s32.totalorder %s23, 1
      %p72 = por %p70, %p71
      %p74 = scmp.ne.s32.totalorder %s57, %s73
      %p75 = scmp.eq.s32.totalorder %s23, 0
      %p76 = por %p74, %p75
      %s77 = ssub.s32 %s17, %s24
      %p78 = scmp.eq.s32.totalorder %s77, 0
      %s80 = sadd.s32 %s79, 1
      %s81 = scalar_select %p78, %s79, %s80
      %p84 = pneg %p78
      %p85 = scmp.eq.s32.totalorder %s17, 1
      %p86 = por %p84, %p85
      %p87 = scmp.ne.s32.totalorder %s79, %s82
      %p88 = scmp.eq.s32.totalorder %s17, 0
      %p89 = por %p87, %p88
      %p90 = scmp.ne.s32.totalorder %s79, %s82
      %p91 = scmp.eq.s32.totalorder %s22, 1
      %p92 = por %p90, %p91
      %p93 = scmp.ne.s32.totalorder %s82, %s83
      %p94 = scmp.eq.s32.totalorder %s22, 0
      %p95 = por %p93, %p94
      %p96 = scmp.ne.s32.totalorder %s82, %s83
      %p97 = scmp.eq.s32.totalorder %s23, 1
      %p98 = por %p96, %p97
      %p100 = scmp.ne.s32.totalorder %s83, %s99
      %p101 = scmp.eq.s32.totalorder %s23, 0
      %p102 = por %p100, %p101
      %p103 = scmp.le.s32.totalorder 1, %s17
      %p104 = scmp.lt.s32.totalorder %s17, 3
      %p105 = pnand %p103, %p104
      %p106 = pneg %p105
      // Predicated region
      $region9: #{tpu_custom_call.1} parent=5 // pred_check
        _
      $region10: #{tpu_custom_call.1} parent=5 // pred_check_branch
        %108 = sbr.rel (%p105) target = $region12
      $region11: #{tpu_custom_call.1} parent=5 // pred_region
        %s109 = ssub.s32 %s17, 1
      $region12: #{tpu_custom_call.1} parent=5 // pred_fallthru
        _
      %p110 = scmp.lt.s32.totalorder %s17, 2
      // Predicated region
      $region13: #{tpu_custom_call.1} parent=5 // pred_check
        %p111 = pneg %p110
      $region14: #{tpu_custom_call.1} parent=5 // pred_check_branch
        %113 = sbr.rel (%p111) target = $region16
      $region15: #{tpu_custom_call.1} parent=5 // pred_region
        // Predicated region
        $region17: #{tpu_custom_call.1} parent=15 // pred_check
          %p114 = pneg %p37
        $region18: #{tpu_custom_call.1} parent=15 // pred_check_branch
          %116 = sbr.rel (%p114) target = $region20
        $region19: #{tpu_custom_call.1} parent=15 // pred_region
          %s117 = sand.u32 %s27, 1
          %s118 = scalar_lea.sflag [#allocation3], %s117
          %s119 = sand.u32 %s27, 1
          %s120 = smul.addr %s119, 8
          %s121 = scalar_lea.vmem [#allocation2], %s120
          %s123 = ssub.s32 128, 128
          %124 = vsyncadd %s118, %s123
          %s125 = smul.addr %s17, 128
          %s126 = scalar_lea.hbm %s0, %s125
          %s128 = sshll.u32 %s121, 4
          %s129 = int_to_ptr.vmem [resolvable:$true] %s128
          %131 = dma.hbm_to_vmem [thread:$0]  %s126, 128, %s129, %s118
        $region20: #{tpu_custom_call.1} parent=15 // pred_fallthru
          _
        // Predicated region
        $region21: #{tpu_custom_call.1} parent=15 // pred_check
          %p132 = pneg %p63
        $region22: #{tpu_custom_call.1} parent=15 // pred_check_branch
          %134 = sbr.rel (%p132) target = $region24
        $region23: #{tpu_custom_call.1} parent=15 // pred_region
          %s135 = sand.u32 %s53, 1
          %s136 = scalar_lea.sflag [#allocation6], %s135
          %s137 = sand.u32 %s53, 1
          %s138 = smul.addr %s137, 8
          %s139 = scalar_lea.vmem [#allocation5], %s138
          %s141 = ssub.s32 128, 128
          %142 = vsyncadd %s136, %s141
          %s143 = smul.addr %s17, 128
          %s144 = scalar_lea.hbm %s1, %s143
          %s146 = sshll.u32 %s139, 4
          %s147 = int_to_ptr.vmem [resolvable:$true] %s146
          %149 = dma.hbm_to_vmem [thread:$0]  %s144, 128, %s147, %s136
        $region24: #{tpu_custom_call.1} parent=15 // pred_fallthru
          _
      $region16: #{tpu_custom_call.1} parent=5 // pred_fallthru
        _
      %p150 = scmp.le.s32.totalorder 1, %s17
      %p151 = scmp.lt.s32.totalorder %s17, 3
      %p152 = pnand %p150, %p151
      %p153 = pneg %p152
      // Predicated region
      $region25: #{tpu_custom_call.1} parent=5 // pred_check
        _
      $region26: #{tpu_custom_call.1} parent=5 // pred_check_branch
        %155 = sbr.rel (%p152) target = $region28
      $region27: #{tpu_custom_call.1} parent=5 // pred_region
        %s156 = ssub.s32 %s17, 1
        %s157 = sand.u32 %s30, 1
        %s158 = scalar_lea.sflag [#allocation3], %s157
        %s159 = sand.u32 %s30, 1
        %s160 = smul.addr %s159, 8
        %s161 = scalar_lea.vmem [#allocation2], %s160
        // Predicated region
        $region29: #{tpu_custom_call.1} parent=27 // pred_check
          %p162 = pneg %p43
        $region30: #{tpu_custom_call.1} parent=27 // pred_check_branch
          %164 = sbr.rel (%p162) target = $region32
        $region31: #{tpu_custom_call.1} parent=27 // pred_region
          %165 = dma.done %s158, 128
        $region32: #{tpu_custom_call.1} parent=27 // pred_fallthru
          _
        %s166 = sand.u32 %s56, 1
        %s167 = scalar_lea.sflag [#allocation6], %s166
        %s168 = sand.u32 %s56, 1
        %s169 = smul.addr %s168, 8
        %s170 = scalar_lea.vmem [#allocation5], %s169
        // Predicated region
        $region33: #{tpu_custom_call.1} parent=27 // pred_check
          %p171 = pneg %p69
        $region34: #{tpu_custom_call.1} parent=27 // pred_check_branch
          %173 = sbr.rel (%p171) target = $region36
        $region35: #{tpu_custom_call.1} parent=27 // pred_region
          %174 = dma.done %s167, 128
        $region36: #{tpu_custom_call.1} parent=27 // pred_fallthru
          _
        %s175 = sand.u32 %s30, 1
        %s176 = scalar_lea.sflag [#allocation3], %s175
        %s177 = sand.u32 %s30, 1
        %s178 = smul.addr %s177, 8
        %s179 = scalar_lea.vmem [#allocation2], %s178
        %p180 = pneg %p43
        %p181 = pneg %p40
        %s182 = sand.u32 %s56, 1
        %s183 = scalar_lea.sflag [#allocation6], %s182
        %s184 = sand.u32 %s56, 1
        %s185 = smul.addr %s184, 8
        %s186 = scalar_lea.vmem [#allocation5], %s185
        %p187 = pneg %p69
        %p188 = pneg %p66
        %p189 = pneg %p95
        %p190 = pneg %p92
        %s191 = sand.u32 %s82, 1
        %s192 = scalar_lea.sflag [#allocation4], %s191
        %s193 = sand.u32 %s82, 1
        %s194 = smul.addr %s193, 8
        %s195 = scalar_lea.vmem [#allocation7], %s194
        %v196 = vld [vmem:[%s161] sm:$0xff]
        %v197 = vld [vmem:[%s170] sm:$0xff]
        %v198 = vmax.f32 %v197, 0.0
        %v199 = vmin.f32 %v198, 1.0
        %v200 = vlog2.pop %v199
        %v201 = vmul.f32 %v200, 0.6931472
        %v202 = vmax.f32 %v201, -100.0
        %v203 = vsub.f32 0.0, %v199
        %v204 = vadd.f32 %v203, 1.0
        %v205 = vlog2.pop %v204
        %v206 = vmul.f32 %v205, 0.6931472
        %v207 = vmul.f32 -0.5, %v203
        %v208 = vadd.f32 %v207, 1.0
        %v209 = vmul.f32 %v208, %v203
        %v210 = vand.u32 2147483647, %v203
        %vm211 = vcmp.lt.f32.partialorder %v210, 0.0004427343
        %v212 = vsel %vm211, %v209, %v206
        %v213 = vmax.f32 %v212, -100.0
        %v214 = vmul.f32 %v196, %v202
        %v215 = vsub.f32 1.0, %v196
        %v216 = vmul.f32 %v215, %v213
        %v217 = vadd.f32 %v214, %v216
        %v218 = vsub.f32 0.0, %v217
        %v219 = vadd.f32 %v218, 0.0
        %v220 = vadd.f32 %v219, 0.0
        %221 = vst [vmem:[%s195] sm:$0xff] %v220
        %s222 = sand.u32 %s82, 1
        %s223 = scalar_lea.sflag [#allocation4], %s222
        %s224 = sand.u32 %s82, 1
        %s225 = smul.addr %s224, 8
        %s226 = scalar_lea.vmem [#allocation7], %s225
        // Predicated region
        $region37: #{tpu_custom_call.1} parent=27 // pred_check
          %p227 = pneg %p92
        $region38: #{tpu_custom_call.1} parent=27 // pred_check_branch
          %229 = sbr.rel (%p227) target = $region40
        $region39: #{tpu_custom_call.1} parent=27 // pred_region
          %s231 = ssub.s32 128, 128
          %232 = vsyncadd %s223, %s231
          %s233 = smul.addr %s22, 128
          %s234 = scalar_lea.hbm %s2, %s233
          %s236 = sshll.u32 %s226, 4
          %s237 = int_to_ptr.vmem [resolvable:$true] %s236
          %239 = dma.vmem_to_hbm [thread:$0]  %s237, 128, %s234, %s223
        $region40: #{tpu_custom_call.1} parent=27 // pred_fallthru
          _
      $region28: #{tpu_custom_call.1} parent=5 // pred_fallthru
        _
      %p240 = scmp.le.s32.totalorder 2, %s17
      // Predicated region
      $region41: #{tpu_custom_call.1} parent=5 // pred_check
        %p241 = pneg %p240
      $region42: #{tpu_custom_call.1} parent=5 // pred_check_branch
        %243 = sbr.rel (%p241) target = $region44
      $region43: #{tpu_custom_call.1} parent=5 // pred_region
        %s244 = ssub.s32 %s17, 2
        // Predicated region
        $region45: #{tpu_custom_call.1} parent=43 // pred_check
          %p245 = pneg %p98
        $region46: #{tpu_custom_call.1} parent=43 // pred_check_branch
          %247 = sbr.rel (%p245) target = $region48
        $region47: #{tpu_custom_call.1} parent=43 // pred_region
          %s248 = sand.u32 %s83, 1
          %s249 = scalar_lea.sflag [#allocation4], %s248
          %s250 = sand.u32 %s83, 1
          %s251 = smul.addr %s250, 8
          %s252 = scalar_lea.vmem [#allocation7], %s251
          %253 = dma.done %s249, 128
        $region48: #{tpu_custom_call.1} parent=43 // pred_fallthru
          _
      $region44: #{tpu_custom_call.1} parent=5 // pred_fallthru
        _
    $region6: #{tpu_custom_call.1} parent=1 // loop_footer
      %s21 = sadd.s32 1, %s17
    $region7: #{tpu_custom_call.1} parent=1 // loop_footer_branch
      %16 = sbr.rel target = $region3
    $region8: #{tpu_custom_call.1} parent=1 // loop_exit
      _
    %254 = vsyncpa [#allocation3], 1
    %s255 = scalar_lea.sflag [#allocation3], 1
    %256 = vsyncpa %s255, 1
    %257 = vsyncpa [#allocation6], 1
    %s258 = scalar_lea.sflag [#allocation6], 1
    %259 = vsyncpa %s258, 1
    %260 = vsyncpa [#allocation4], 1
    %s261 = scalar_lea.sflag [#allocation4], 1
    %262 = vsyncpa %s261, 1

</llo_original>
